<compile_context>
chip_gen: v7x
topology: tpu7x:2x2x1
jax: 0.10.0
libtpu: 0.0.40
codegen_flags: <defaults>
</compile_context>

<pallas_src>
import jax
import jax.numpy as jnp
from jax.experimental import pallas as pl
from jax.experimental.pallas import tpu as pltpu


_TARGET_BLOCK_BYTES = 8 << 20      # ~8 MiB input tile (v7x-friendly; fine on v5e/v6e)
_VMEM_LIMIT_BYTES = 48 << 20       # <= 48 MiB scoped VMEM (headroom on v7x's 64 MiB)
_LANE = 128


def _round_up(a, b):
    return ((a + b - 1) // b) * b


def _frozen_bn_kernel(x_ref, p_ref, o_ref):
    # y = x * scale + shift ; scale/shift are per-row (sublane) f32 vectors
    # broadcasting across the lane dimension (the H*W tile).
    x = x_ref[...].astype(jnp.float32)
    scale = p_ref[:, 0:1]          # (tile_r, 1) f32
    shift = p_ref[:, 1:2]          # (tile_r, 1) f32
    o_ref[...] = (x * scale + shift).astype(o_ref.dtype)


def _pick_tiles(rows, cols, in_item, out_item,
                target_block_bytes=_TARGET_BLOCK_BYTES,
                vmem_limit_bytes=_VMEM_LIMIT_BYTES):
    """Choose (tile_r, tile_c) for the (rows, cols) streaming affine.

    Accounts for double-buffered input + output blocks AND the lane-padded
    (tile_r, 2)->(tile_r, 128) f32 param slab when budgeting VMEM.
    """
    pack = max(8, 32 // max(1, in_item))     # sublane packing: f32 8, bf16 16, int8 32
    budget = int(0.85 * vmem_limit_bytes)    # leave headroom under the scoped limit
    param_row_bytes = _LANE * 4              # (tile_r, 2) f32 pads to 128 lanes

    # --- columns: keep the full H*W extent (lane-dense single DMA per row, and
    #     block last dim == full dim satisfies the (8,128) rule for any H*W).
    #     Only tile cols when even a minimal-row full-width block can't fit. ---
    min_rows_full = 2 * pack * (cols * (in_item + out_item) + param_row_bytes)
    if min_rows_full <= budget:
        tile_c = cols
    else:
        tile_c = max(_LANE, (target_block_bytes // (64 * in_item)) // _LANE * _LANE)
        tile_c = min(tile_c, _round_up(cols, _LANE))

    # --- rows ---
    if rows <= pack:
        # Full extent: always a legal block shape, nothing to pipeline anyway.
        tile_r = rows
    else:
        per_row = tile_c * (in_item + out_item) + param_row_bytes
        tr_target = max(1, target_block_bytes // max(1, tile_c * in_item))
        tr_vmem = max(1, budget // (2 * per_row))          # 2x for double buffering
        tr_steps = max(1, -(-rows // 8))                   # keep >= ~8 grid steps
        tr = min(tr_target, tr_vmem, tr_steps)
        tr = max(pack, (tr // pack) * pack)                # sublane-pack aligned
        tile_r = min(tr, rows)                             # never exceeds rows here
    return tile_r, tile_c


def frozen_batch_norm_2d(x, weight, bias, running_mean, running_var, eps=1e-5):
    """x: (N, C, H, W). weight/bias/running_mean/running_var: (C,)."""
    N, C, H, W = x.shape

    # Tiny per-channel parameter glue stays in plain JAX (f32).
    w32 = weight.astype(jnp.float32)
    b32 = bias.astype(jnp.float32)
    m32 = running_mean.astype(jnp.float32)
    v32 = running_var.astype(jnp.float32)
    scale = w32 * jax.lax.rsqrt(v32 + eps)          # (C,)
    shift = b32 - m32 * scale                       # (C,)

    rows, cols = N * C, H * W
    x2d = x.reshape(rows, cols)                     # contiguity-preserving, free

    # One (rows, 2) f32 slab; row order matches NCHW rows (n-major, c-minor).
    params = jnp.tile(jnp.stack([scale, shift], axis=-1), (N, 1))   # (rows, 2)

    in_item = jnp.dtype(x.dtype).itemsize
    tile_r, tile_c = _pick_tiles(rows, cols, in_item, in_item)

    # No padding copies: ragged last blocks are padded (reads) / masked (writes)
    # by Pallas.
    grid = (pl.cdiv(rows, tile_r), pl.cdiv(cols, tile_c))

    out2d = pl.pallas_call(
        _frozen_bn_kernel,
        out_shape=jax.ShapeDtypeStruct((rows, cols), x.dtype),
        grid_spec=pltpu.PrefetchScalarGridSpec(
            num_scalar_prefetch=0,
            grid=grid,
            in_specs=[
                pl.BlockSpec((tile_r, tile_c), lambda i, j: (i, j)),
                pl.BlockSpec((tile_r, 2), lambda i, j: (i, 0)),
            ],
            out_specs=pl.BlockSpec((tile_r, tile_c), lambda i, j: (i, j)),
        ),
        compiler_params=pltpu.CompilerParams(
            dimension_semantics=("parallel", "parallel"),
            vmem_limit_bytes=_VMEM_LIMIT_BYTES,
        ),
    )(x2d, params)

    return out2d.reshape(N, C, H, W)


if __name__ == "__main__":
    key = jax.random.PRNGKey(0)
    eps = 1e-5

    def make_inputs(k, N, C, H, W, dtype):
        kx, kw, kb, km, kv = jax.random.split(k, 5)
        x = jax.random.normal(kx, (N, C, H, W), dtype=jnp.float32).astype(dtype)
        weight = jnp.ones((C,), jnp.float32) + 0.1 * jax.random.normal(kw, (C,), jnp.float32)
        bias = 0.1 * jax.random.normal(kb, (C,), jnp.float32)
        running_mean = 0.1 * jax.random.normal(km, (C,), jnp.float32)
        running_var = (jnp.ones((C,), jnp.float32) - eps) + 0.05 * jnp.abs(
            jax.random.normal(kv, (C,), jnp.float32))
        return x, weight, bias, running_mean, running_var

    def reference(x, w, b, m, v):
        s = (w * jax.lax.rsqrt(v + eps)).reshape(1, -1, 1, 1)
        sh = (b - m * (w * jax.lax.rsqrt(v + eps))).reshape(1, -1, 1, 1)
        return x.astype(jnp.float32) * s + sh

    cases = [
        ((2, 4, 16, 16), jnp.float32, 1e-6),   # primary small shape
        ((3, 5, 9, 9), jnp.float32, 1e-6),     # rows % tile_r != 0 (ragged), cols < 128
        ((2, 4, 16, 16), jnp.bfloat16, 2e-2),  # bf16 I/O
    ]
    for case_key, (shape, dtype, tol) in zip(jax.random.split(key, len(cases)), cases):
        x, w, b, m, v = make_inputs(case_key, *shape, dtype)
        out = jax.block_until_ready(frozen_batch_norm_2d(x, w, b, m, v, eps))
        ref = reference(x, w, b, m, v).astype(dtype)
        assert out.shape == x.shape and out.dtype == x.dtype
        assert jnp.allclose(out.astype(jnp.float32), ref.astype(jnp.float32),
                            atol=tol, rtol=tol), f"mismatch for {shape} {dtype}"

    print("KERNEL_OK")
</pallas_src>

<mosaic_0001>
module attributes {stable_mosaic.version = 11 : i64} {
  func.func @_frozen_bn_kernel(%arg0: i32, %arg1: i32, %arg2: memref<8x256xf32, #tpu.memory_space<vmem>>, %arg3: memref<8x2xf32, #tpu.memory_space<vmem>>, %arg4: memref<8x256xf32, #tpu.memory_space<vmem>>) attributes {dimension_semantics = [#tpu.dimension_semantics<parallel>, #tpu.dimension_semantics<parallel>], iteration_bounds = array<i64: 1, 1>, scalar_prefetch = 0 : i64, scratch_operands = 0 : i64, tpu.core_type = #tpu.core_type<tc>, window_params = [{transform_indices = @transform_0, window_bounds = array<i64: 8, 256>}, {transform_indices = @transform_1, window_bounds = array<i64: 8, 2>}, {transform_indices = @transform_2, window_bounds = array<i64: 8, 256>}]} {
    %c0 = arith.constant 0 : index
    %c0_0 = arith.constant 0 : index
    %0 = vector.load %arg2[%c0, %c0_0] : memref<8x256xf32, #tpu.memory_space<vmem>>, vector<8x256xf32>
    %c0_1 = arith.constant 0 : index
    %c0_2 = arith.constant 0 : index
    %1 = vector.load %arg3[%c0_1, %c0_2] : memref<8x2xf32, #tpu.memory_space<vmem>>, vector<8x1xf32>
    %c0_3 = arith.constant 0 : index
    %c1 = arith.constant 1 : index
    %2 = vector.load %arg3[%c0_3, %c1] : memref<8x2xf32, #tpu.memory_space<vmem>>, vector<8x1xf32>
    %3 = vector.broadcast %1 : vector<8x1xf32> to vector<8x256xf32>
    %4 = arith.mulf %0, %3 : vector<8x256xf32>
    %5 = vector.broadcast %2 : vector<8x1xf32> to vector<8x256xf32>
    %6 = arith.addf %4, %5 : vector<8x256xf32>
    %c0_4 = arith.constant 0 : index
    %c0_5 = arith.constant 0 : index
    %7 = vector.load %arg4[%c0_4, %c0_5] : memref<8x256xf32, #tpu.memory_space<vmem>>, vector<8x256xf32>
    tpu.vector_store %arg4[%c0_4, %c0_5], %6 {strides = array<i32>} : memref<8x256xf32, #tpu.memory_space<vmem>>, vector<8x256xf32>,
    return
  }
  func.func @transform_0(%arg0: i32, %arg1: i32) -> (i32, i32) {
    %c0_i32 = arith.constant 0 : i32
    return %arg0, %arg1 : i32, i32
  }
  func.func @transform_1(%arg0: i32, %arg1: i32) -> (i32, i32) {
    %c0_i32 = arith.constant 0 : i32
    %c0_i32_0 = arith.constant 0 : i32
    return %arg0, %c0_i32 : i32, i32
  }
  func.func @transform_2(%arg0: i32, %arg1: i32) -> (i32, i32) {
    %c0_i32 = arith.constant 0 : i32
    return %arg0, %arg1 : i32, i32
  }
}

</mosaic_0001>

<llo_original>
// kernel: tpu_custom_call.1
$region0: #{tpu_custom_call.1}
  #allocation0 [shape = 'u32[]', space=smem, size = 0x4, offset = 0x4, fixed_abs, tag = 'smem constant byte address 0x4 - core index']
  #allocation1 [shape = 'u32[144,128]{1,0:T(1,128)}', space=vmem, size = 0x12000, scoped, tag = 'internal scratch']
  %s0 = inlined_call_operand.hbm [shape: f32[8,256], index: 0, kind: input, shape index: {}]
  %s1 = inlined_call_operand.vmem [shape: f32[8,2], index: 1, kind: input, shape index: {}]
  %s2 = inlined_call_operand.hbm [shape: f32[8,256], index: 2, kind: output, shape index: {}]
  %s3 = sld [smem:[#allocation0]]
  $region22: #{tpu_custom_call.1} parent=0
    _
  %s5 = ssub.s32 1, %s3
  %s6 = scalar_select 0, %s5, %s3
  $region1: #{tpu_custom_call.1} parent=0
    #allocation2 [shape = 'u8[8192]{0}', space=vmem, size = 0x2000, scoped, tag = 'input window, operand 0, single buffered']
    #allocation3 [shape = 's32[1]{0}', space=sflag, size = 0x4, scoped, tag = 'scoped memory for tpu_custom_call.1']
    #allocation4 [shape = 's32[1]{0}', space=sflag, size = 0x4, scoped, tag = 'scoped memory for tpu_custom_call.1']
    #allocation5 [shape = 'u8[8192]{0}', space=vmem, size = 0x2000, scoped, tag = 'output window, operand 0, single buffered']
    %7 = vsyncpa [#allocation3], 0
    %8 = vsyncpa [#allocation4], 0
    // Predicated region
    $region2: #{tpu_custom_call.1} parent=1 // pred_check
      _
    $region3: #{tpu_custom_call.1} parent=1 // pred_check_branch
      %10 = sbr.rel (0) target = $region5
    $region4: #{tpu_custom_call.1} parent=1 // pred_region
      %s12 = ssub.s32 256, 256
      %13 = vsyncadd [#allocation3], %s12
      %s15 = sshll.u32 [#allocation2], 4
      %s16 = int_to_ptr.vmem [resolvable:$true] %s15
      %18 = dma.hbm_to_vmem [thread:$0]  %s0, 256, %s16, [#allocation3]
    $region5: #{tpu_custom_call.1} parent=1 // pred_fallthru
      _
    // Predicated region
    $region6: #{tpu_custom_call.1} parent=1 // pred_check
      _
    $region7: #{tpu_custom_call.1} parent=1 // pred_check_branch
      %20 = sbr.rel (0) target = $region9
    $region8: #{tpu_custom_call.1} parent=1 // pred_region
      _
    $region9: #{tpu_custom_call.1} parent=1 // pred_fallthru
      _
    // Predicated region
    $region10: #{tpu_custom_call.1} parent=1 // pred_check
      _
    $region11: #{tpu_custom_call.1} parent=1 // pred_check_branch
      %22 = sbr.rel (0) target = $region13
    $region12: #{tpu_custom_call.1} parent=1 // pred_region
      %23 = dma.done [#allocation3], 256
    $region13: #{tpu_custom_call.1} parent=1 // pred_fallthru
      _
    %v24 = vld [vmem:[#allocation2] sm:$0xff]
    %v25 = vld [vmem:[#allocation2 + $0x8] sm:$0xff]
    %v26 = vld [vmem:[%s1] sm:$0xff]
    %28 = vset.pattern.permute.xlu0 0
    %29 = vperm.xlu0 %28, %v26
    %v30 = vpop.permute.xlu0 %29
    %v32 = vmul.f32 %v24, %v30
    %v33 = vmul.f32 %v25, %v30
    %34 = vset.pattern.permute.xlu0 1
    %35 = vperm.xlu0 %34, %v26
    %v36 = vpop.permute.xlu0 %35
    %v38 = vadd.f32 %v32, %v36
    %v39 = vadd.f32 %v33, %v36
    %40 = vst [vmem:[#allocation5] sm:$0xff] %v38
    %41 = vst [vmem:[#allocation5 + $0x8] sm:$0xff] %v39
    // Predicated region
    $region14: #{tpu_custom_call.1} parent=1 // pred_check
      _
    $region15: #{tpu_custom_call.1} parent=1 // pred_check_branch
      %43 = sbr.rel (0) target = $region17
    $region16: #{tpu_custom_call.1} parent=1 // pred_region
      %s45 = ssub.s32 256, 256
      %46 = vsyncadd [#allocation4], %s45
      %s48 = sshll.u32 [#allocation5], 4
      %s49 = int_to_ptr.vmem [resolvable:$true] %s48
      %51 = dma.vmem_to_hbm [thread:$0]  %s49, 256, %s2, [#allocation4]
    $region17: #{tpu_custom_call.1} parent=1 // pred_fallthru
      _
    // Predicated region
    $region18: #{tpu_custom_call.1} parent=1 // pred_check
      _
    $region19: #{tpu_custom_call.1} parent=1 // pred_check_branch
      %53 = sbr.rel (0) target = $region21
    $region20: #{tpu_custom_call.1} parent=1 // pred_region
      %54 = dma.done [#allocation4], 256
    $region21: #{tpu_custom_call.1} parent=1 // pred_fallthru
      _
    %55 = vsyncpa [#allocation3], 1
    %56 = vsyncpa [#allocation4], 1

</llo_original>
